<compile_context>
chip_gen: v6e
topology: v6e:2x2x1
jax: 0.10.0
libtpu: 0.0.40
codegen_flags: <defaults>
</compile_context>

<pallas_src>
import jax
import jax.numpy as jnp
from jax.experimental import pallas as pl
from jax.experimental.pallas import tpu as pltpu

_LANE = 128


def _round_up(n: int, m: int) -> int:
    return ((n + m - 1) // m) * m


def _controller_kernel(x_ref, w1_ref, b1_ref, w2_ref, b2_ref, o_ref):
    # MXU dots take bf16 operands with f32 accumulation; bias/ReLU on VPU in f32.
    x = x_ref[...].astype(w1_ref.dtype)
    h = jnp.dot(x, w1_ref[...], preferred_element_type=jnp.float32)
    h = jnp.maximum(h + b1_ref[...], 0.0)          # f32 bias + ReLU
    h = h.astype(w2_ref.dtype)                     # bf16 operand for 2nd dot
    out = jnp.dot(h, w2_ref[...], preferred_element_type=jnp.float32)
    out = out + b2_ref[...]                        # f32 bias
    o_ref[...] = out.astype(o_ref.dtype)


def prepare_controller_params(w1, b1, w2, b2, compute_dtype=jnp.bfloat16):
    """One-time parameter prep (hoisted out of the per-forward path):
      * zero-pad the hidden dim to a multiple of 128 (300 -> 384).  Exact:
        padded hidden units give ReLU(0)=0 and multiply zero rows of w2.
      * cast weights to `compute_dtype` (bf16) for the MXU; biases stay f32
        and are reshaped to (1, D) rows for lane-dense broadcast adds.
    """
    n_hidden = w1.shape[1]
    n_out = w2.shape[1]
    h_pad = _round_up(n_hidden, _LANE)
    if h_pad != n_hidden:
        pad = h_pad - n_hidden
        w1 = jnp.pad(w1, ((0, 0), (0, pad)))
        b1 = jnp.pad(b1, ((0, pad),))
        w2 = jnp.pad(w2, ((0, pad), (0, 0)))
    return (w1.astype(compute_dtype),
            b1.astype(jnp.float32).reshape(1, h_pad),
            w2.astype(compute_dtype),
            b2.astype(jnp.float32).reshape(1, n_out))


def controller_forward(x, params, *, batch_tile=1024, small_batch_cutoff=512):
    """x: [B, n_in]; params = prepare_controller_params(...) -> [B, n_out]."""
    w1p, b1p, w2p, b2p = params
    B, n_in = x.shape
    h_pad = w1p.shape[1]
    n_out = w2p.shape[1]

    if B <= small_batch_cutoff:
        # Small batch: single grid-free call, every operand one full VMEM block.
        vmem = pl.BlockSpec(memory_space=pltpu.MemorySpace.VMEM)
        return pl.pallas_call(
            _controller_kernel,
            out_shape=jax.ShapeDtypeStruct((B, n_out), x.dtype),
            in_specs=[vmem, vmem, vmem, vmem, vmem],
            out_specs=vmem,
        )(x, w1p, b1p, w2p, b2p)

    # Large batch: tile only the batch axis; partial tail block handled by
    # Pallas (masked writeback), so no wrapper-side pad/copy of x.  Weights
    # and biases keep constant index_maps -> VMEM-resident across steps.
    tb = batch_tile
    return pl.pallas_call(
        _controller_kernel,
        out_shape=jax.ShapeDtypeStruct((B, n_out), x.dtype),
        grid=(pl.cdiv(B, tb),),
        in_specs=[
            pl.BlockSpec((tb, n_in), lambda i: (i, 0)),
            pl.BlockSpec((n_in, h_pad), lambda i: (0, 0)),
            pl.BlockSpec((1, h_pad), lambda i: (0, 0)),
            pl.BlockSpec((h_pad, n_out), lambda i: (0, 0)),
            pl.BlockSpec((1, n_out), lambda i: (0, 0)),
        ],
        out_specs=pl.BlockSpec((tb, n_out), lambda i: (i, 0)),
        compiler_params=pltpu.CompilerParams(
            dimension_semantics=("parallel",)),  # shards batch over v7x's 2 TCs
    )(x, w1p, b1p, w2p, b2p)


def init_controller_params(key, n_in, n_out, n_hidden=300, dtype=jnp.float32):
    """Deterministic synthetic init (uniform, PyTorch-Linear-like bounds)."""
    k1, k2, k3, k4 = jax.random.split(key, 4)
    bound1 = 1.0 / (n_in ** 0.5)
    bound2 = 1.0 / (n_hidden ** 0.5)
    w1 = jax.random.uniform(k1, (n_in, n_hidden), dtype, -bound1, bound1)
    b1 = jax.random.uniform(k2, (n_hidden,), dtype, -bound1, bound1)
    w2 = jax.random.uniform(k3, (n_hidden, n_out), dtype, -bound2, bound2)
    b2 = jax.random.uniform(k4, (n_out,), dtype, -bound2, bound2)
    return w1, b1, w2, b2


if __name__ == "__main__":
    key = jax.random.PRNGKey(0)
    kx, kp, kb = jax.random.split(key, 3)

    batch, n_in, n_hidden, n_out = 8, 32, 300, 16
    w1, b1, w2, b2 = init_controller_params(kp, n_in, n_out, n_hidden)

    # One-time parameter prep (hidden pad to 384 + bf16 weight cast), hoisted
    # out of the steady-state forward path.
    params = prepare_controller_params(w1, b1, w2, b2)

    # bf16 MXU operands -> loosened tolerances vs the f32 reference.
    ATOL, RTOL = 5e-2, 5e-2

    # Small-batch (grid-free) path.
    x = jax.random.normal(kx, (batch, n_in), jnp.float32)
    out = controller_forward(x, params)
    jax.block_until_ready(out)
    ref = jnp.maximum(x @ w1 + b1, 0.0) @ w2 + b2
    assert out.shape == (batch, n_out)
    assert jnp.allclose(out, ref, atol=ATOL, rtol=RTOL)

    # Batch-tiled path with a partial tail block (B not a multiple of tb),
    # weights VMEM-resident, batch axis "parallel".
    big_batch = 4100
    xb = jax.random.normal(kb, (big_batch, n_in), jnp.float32)
    out_b = controller_forward(xb, params, batch_tile=1024)
    jax.block_until_ready(out_b)
    ref_b = jnp.maximum(xb @ w1 + b1, 0.0) @ w2 + b2
    assert out_b.shape == (big_batch, n_out)
    assert jnp.allclose(out_b, ref_b, atol=ATOL, rtol=RTOL)

    print("KERNEL_OK")
</pallas_src>

<mosaic_0001>
module attributes {stable_mosaic.version = 11 : i64} {
  func.func @_controller_kernel(%arg0: memref<8x32xf32, #tpu.memory_space<vmem>>, %arg1: memref<32x384xbf16, #tpu.memory_space<vmem>>, %arg2: memref<1x384xf32, #tpu.memory_space<vmem>>, %arg3: memref<384x16xbf16, #tpu.memory_space<vmem>>, %arg4: memref<1x16xf32, #tpu.memory_space<vmem>>, %arg5: memref<8x16xf32, #tpu.memory_space<vmem>>) attributes {dimension_semantics = [], scalar_prefetch = 0 : i64, scratch_operands = 0 : i64, tpu.core_type = #tpu.core_type<tc>} {
    %c0 = arith.constant 0 : index
    %c0_0 = arith.constant 0 : index
    %0 = vector.load %arg0[%c0, %c0_0] : memref<8x32xf32, #tpu.memory_space<vmem>>, vector<8x32xf32>
    %1 = arith.truncf %0 : vector<8x32xf32> to vector<8x32xbf16>
    %c0_1 = arith.constant 0 : index
    %c0_2 = arith.constant 0 : index
    %2 = vector.load %arg1[%c0_1, %c0_2] : memref<32x384xbf16, #tpu.memory_space<vmem>>, vector<32x384xbf16>
    %cst = arith.constant dense<0.000000e+00> : vector<8x384xf32>
    %3 = tpu.matmul %1, %2, %cst {dimension_numbers = #tpu.dot_dimension_numbers<[1], [0], [0], [1], [0, 0, 1, 1], [], []>} : vector<8x32xbf16>, vector<32x384xbf16>, vector<8x384xf32> -> vector<8x384xf32>
    %c0_3 = arith.constant 0 : index
    %c0_4 = arith.constant 0 : index
    %4 = vector.load %arg2[%c0_3, %c0_4] : memref<1x384xf32, #tpu.memory_space<vmem>>, vector<1x384xf32>
    %5 = vector.broadcast %4 : vector<1x384xf32> to vector<8x384xf32>
    %6 = arith.addf %3, %5 : vector<8x384xf32>
    %cst_5 = arith.constant 0.000000e+00 : f32
    %7 = vector.broadcast %cst_5 : f32 to vector<8x384xf32>
    %8 = arith.maximumf %6, %7 : vector<8x384xf32>
    %9 = arith.truncf %8 : vector<8x384xf32> to vector<8x384xbf16>
    %c0_6 = arith.constant 0 : index
    %c0_7 = arith.constant 0 : index
    %10 = vector.load %arg3[%c0_6, %c0_7] : memref<384x16xbf16, #tpu.memory_space<vmem>>, vector<384x16xbf16>
    %cst_8 = arith.constant dense<0.000000e+00> : vector<8x16xf32>
    %11 = tpu.matmul %9, %10, %cst_8 {dimension_numbers = #tpu.dot_dimension_numbers<[1], [0], [0], [1], [0, 0, 1, 1], [], []>} : vector<8x384xbf16>, vector<384x16xbf16>, vector<8x16xf32> -> vector<8x16xf32>
    %c0_9 = arith.constant 0 : index
    %c0_10 = arith.constant 0 : index
    %12 = vector.load %arg4[%c0_9, %c0_10] : memref<1x16xf32, #tpu.memory_space<vmem>>, vector<1x16xf32>
    %13 = vector.broadcast %12 : vector<1x16xf32> to vector<8x16xf32>
    %14 = arith.addf %11, %13 : vector<8x16xf32>
    %c0_11 = arith.constant 0 : index
    %c0_12 = arith.constant 0 : index
    %15 = vector.load %arg5[%c0_11, %c0_12] : memref<8x16xf32, #tpu.memory_space<vmem>>, vector<8x16xf32>
    tpu.vector_store %arg5[%c0_11, %c0_12], %14 {strides = array<i32>} : memref<8x16xf32, #tpu.memory_space<vmem>>, vector<8x16xf32>,
    return
  }
}

</mosaic_0001>

<llo_original>
// kernel: tpu_custom_call.1
$region0: #{tpu_custom_call.1}
  #allocation0 [shape = 'u32[]', space=smem, size = 0x4, offset = 0x4, fixed_abs, tag = 'smem constant byte address 0x4 - core index']
  #allocation1 [shape = 'u32[144,128]{1,0:T(1,128)}', space=vmem, size = 0x12000, scoped, tag = 'internal scratch']
  %s0 = inlined_call_operand.vmem [shape: f32[8,32], index: 0, kind: input, shape index: {}]
  %s1 = inlined_call_operand.vmem [shape: bf16[32,384], index: 1, kind: input, shape index: {}]
  %s2 = inlined_call_operand.vmem [shape: f32[1,384], index: 2, kind: input, shape index: {}]
  %s3 = inlined_call_operand.vmem [shape: bf16[384,16], index: 3, kind: input, shape index: {}]
  %s4 = inlined_call_operand.vmem [shape: f32[1,16], index: 4, kind: input, shape index: {}]
  %s5 = inlined_call_operand.hbm [shape: f32[8,16], index: 5, kind: output, shape index: {}]
  %s6 = sld [smem:[#allocation0]]
  $region30: #{tpu_custom_call.1} parent=0
    _
  %s8 = ssub.s32 1, %s6
  %s9 = scalar_select 0, %s8, %s6
  $region1: #{tpu_custom_call.1} parent=0
    #allocation2 [shape = 'u8[4096]{0}', space=vmem, size = 0x1000, scoped, tag = 'output window, operand 0, single buffered']
    #allocation3 [shape = 's32[1]{0}', space=sflag, size = 0x4, scoped, tag = 'scoped memory for tpu_custom_call.1']
    %10 = vsyncpa [#allocation3], 0
    // Predicated region
    $region2: #{tpu_custom_call.1} parent=1 // pred_check
      _
    $region3: #{tpu_custom_call.1} parent=1 // pred_check_branch
      %12 = sbr.rel (0) target = $region5
    $region4: #{tpu_custom_call.1} parent=1 // pred_region
      _
    $region5: #{tpu_custom_call.1} parent=1 // pred_fallthru
      _
    // Predicated region
    $region6: #{tpu_custom_call.1} parent=1 // pred_check
      _
    $region7: #{tpu_custom_call.1} parent=1 // pred_check_branch
      %14 = sbr.rel (0) target = $region9
    $region8: #{tpu_custom_call.1} parent=1 // pred_region
      _
    $region9: #{tpu_custom_call.1} parent=1 // pred_fallthru
      _
    // Predicated region
    $region10: #{tpu_custom_call.1} parent=1 // pred_check
      _
    $region11: #{tpu_custom_call.1} parent=1 // pred_check_branch
      %16 = sbr.rel (0) target = $region13
    $region12: #{tpu_custom_call.1} parent=1 // pred_region
      _
    $region13: #{tpu_custom_call.1} parent=1 // pred_fallthru
      _
    // Predicated region
    $region14: #{tpu_custom_call.1} parent=1 // pred_check
      _
    $region15: #{tpu_custom_call.1} parent=1 // pred_check_branch
      %18 = sbr.rel (0) target = $region17
    $region16: #{tpu_custom_call.1} parent=1 // pred_region
      _
    $region17: #{tpu_custom_call.1} parent=1 // pred_fallthru
      _
    // Predicated region
    $region18: #{tpu_custom_call.1} parent=1 // pred_check
      _
    $region19: #{tpu_custom_call.1} parent=1 // pred_check_branch
      %20 = sbr.rel (0) target = $region21
    $region20: #{tpu_custom_call.1} parent=1 // pred_region
      _
    $region21: #{tpu_custom_call.1} parent=1 // pred_fallthru
      _
    %v22 = vld [vmem:[%s0] sm:$0xff]
    %v23 = vpack.c.bf16 %v22, %v22
    %v24 = vld [vmem:[%s1] sm:$0xff]
    %v25 = vld [vmem:[%s1 + $0x8] sm:$0xf]
    %v26 = vld [vmem:[%s1 + $0xc] sm:$0xff]
    %v27 = vld [vmem:[%s1 + $0x14] sm:$0xf]
    %v28 = vld [vmem:[%s1 + $0x18] sm:$0xff]
    %v29 = vld [vmem:[%s1 + $0x20] sm:$0xf]
    %v30 = vld [vmem:[%s1 + $0x24] sm:$0xff]
    %v31 = vld [vmem:[%s1 + $0x2c] sm:$0xf]
    %v32 = vld [vmem:[%s2] sm:$0x7]
    %v34 = vlaneseq
    %v35 = vshrl.u32 %v34, 7
    %v36 = vsub.s32 0, %v35
    %v37 = vrot.slane %v32, %v36
    %v38 = vlaneseq
    %v39 = vshrl.u32 %v38, 7
    %v40 = vsub.s32 1, %v39
    %v41 = vrot.slane %v32, %v40
    %v42 = vlaneseq
    %v43 = vshrl.u32 %v42, 7
    %v44 = vsub.s32 2, %v43
    %v45 = vrot.slane %v32, %v44
    %v57 = vunpack.c.l.b16 %v24
    %v58 = vunpack.c.h.b16 %v24
    %v59 = vunpack.c.l.b16 %v25
    %v60 = vunpack.c.l.b16 %v26
    %v61 = vunpack.c.h.b16 %v26
    %v62 = vunpack.c.l.b16 %v27
    %v63 = vunpack.c.l.b16 %v28
    %v64 = vunpack.c.h.b16 %v28
    %v65 = vunpack.c.l.b16 %v29
    %v66 = vunpack.c.l.b16 %v30
    %v67 = vunpack.c.h.b16 %v30
    %v68 = vunpack.c.l.b16 %v31
    %v69 = vpack.c.b16 %v60, %v57
    %v70 = vpack.c.b16 %v61, %v58
    %v71 = vpack.c.b16 %v62, %v59
    %v72 = vpack.c.b16 %v66, %v63
    %v73 = vpack.c.b16 %v67, %v64
    %v74 = vpack.c.b16 %v68, %v65
    %vm81 = vcmask 261120
    %v83 = vsel %vm81, %v23, 0
    %85 = vmatprep.subr.bf16.mxu0 0
    %86 = vmatpush1.bf16.msra.mxu0 0
    %87 = vmatprep.subr.bf16.mxu0 0
    %88 = vmatpush1.bf16.msra.mxu0 0
    %89 = vmatprep.subr.bf16.mxu0 0
    %90 = vmatpush1.bf16.msra.mxu0 0
    %91 = vmatprep.subr.bf16.mxu0 0
    %92 = vmatpush1.bf16.msra.mxu0 0
    %93 = vmatprep.subr.bf16.mxu0 0
    %94 = vmatpush1.bf16.msra.mxu0 0
    %95 = vmatprep.subr.bf16.mxu0 0
    %96 = vmatpush1.bf16.msra.mxu0 0
    %97 = vmatprep.subr.bf16.mxu0 %v73
    %98 = vmatpush1.bf16.msra.mxu0 %v72
    %99 = vmatprep.subr.bf16.mxu0 %v70
    %100 = vmatpush1.bf16.msra.mxu0 %v69
    %101 = vmatprep.subr.bf16.mxu0 0
    %102 = vmatpush2.bf16.msra.mxu0 0
    %103 = vmatprep.subr.bf16.mxu0 0
    %104 = vmatpush2.bf16.msra.mxu0 0
    %105 = vmatprep.subr.bf16.mxu0 0
    %106 = vmatpush2.bf16.msra.mxu0 0
    %107 = vmatprep.subr.bf16.mxu0 0
    %108 = vmatpush2.bf16.msra.mxu0 0
    %109 = vmatprep.subr.bf16.mxu0 0
    %110 = vmatpush2.bf16.msra.mxu0 0
    %111 = vmatprep.subr.bf16.mxu0 0
    %112 = vmatpush2.bf16.msra.mxu0 0
    %113 = vmatprep.subr.bf16.mxu0 0
    %114 = vmatpush2.bf16.msra.mxu0 0
    %115 = vmatprep.subr.bf16.mxu0 0
    %116 = vmatpush2.bf16.msra.mxu0 0
    %117 = vmatprep.mubr.bf16.mxu0 0
    %118 = vmatmul.mubr.bf16.gmra.mxu0 %v83
    %v119 = vpop.f32.mrf.mxu0
    %v120 = vadd.f32 %v37, %v119
    %v121 = vpop.f32.mrf.mxu0
    %v122 = vadd.f32 %v41, %v121
    %v123 = vpop.f32.mrf.mxu0
    %v124 = vpop.f32.mrf.mxu0
    %125 = vdwg.mxu0
    %126 = vmatprep.subr.bf16.mxu0 0
    %127 = vmatpush1.bf16.msra.mxu0 0
    %128 = vmatprep.subr.bf16.mxu0 0
    %129 = vmatpush1.bf16.msra.mxu0 0
    %130 = vmatprep.subr.bf16.mxu0 0
    %131 = vmatpush1.bf16.msra.mxu0 0
    %132 = vmatprep.subr.bf16.mxu0 0
    %133 = vmatpush1.bf16.msra.mxu0 0
    %134 = vmatprep.subr.bf16.mxu0 0
    %135 = vmatpush1.bf16.msra.mxu0 0
    %136 = vmatprep.subr.bf16.mxu0 0
    %137 = vmatpush1.bf16.msra.mxu0 0
    %138 = vmatprep.subr.bf16.mxu0 0
    %139 = vmatpush1.bf16.msra.mxu0 %v74
    %140 = vmatprep.subr.bf16.mxu0 0
    %141 = vmatpush1.bf16.msra.mxu0 %v71
    %142 = vmatprep.subr.bf16.mxu0 0
    %143 = vmatpush2.bf16.msra.mxu0 0
    %144 = vmatprep.subr.bf16.mxu0 0
    %145 = vmatpush2.bf16.msra.mxu0 0
    %146 = vmatprep.subr.bf16.mxu0 0
    %147 = vmatpush2.bf16.msra.mxu0 0
    %148 = vmatprep.subr.bf16.mxu0 0
    %149 = vmatpush2.bf16.msra.mxu0 0
    %150 = vmatprep.subr.bf16.mxu0 0
    %151 = vmatpush2.bf16.msra.mxu0 0
    %152 = vmatprep.subr.bf16.mxu0 0
    %153 = vmatpush2.bf16.msra.mxu0 0
    %154 = vmatprep.subr.bf16.mxu0 0
    %155 = vmatpush2.bf16.msra.mxu0 0
    %156 = vmatprep.subr.bf16.mxu0 0
    %157 = vmatpush2.bf16.msra.mxu0 0
    %158 = vmatprep.mubr.bf16.mxu0 0
    %159 = vmatmul.mubr.bf16.gmra.mxu0 %v83
    %v160 = vpop.f32.mrf.mxu0
    %v161 = vadd.f32 %v45, %v160
    %v162 = vpop.f32.mrf.mxu0
    %v163 = vpop.f32.mrf.mxu0
    %v164 = vpop.f32.mrf.mxu0
    %165 = vdwg.mxu0
    %v166 = vmax.f32 %v120, 0.0
    %v167 = vmax.f32 %v122, 0.0
    %v168 = vmax.f32 %v161, 0.0
    %v169 = vpack.c.bf16 %v166, %v166
    %v170 = vpack.c.bf16 %v167, %v167
    %v171 = vpack.c.bf16 %v168, %v168
    %v172 = vld [vmem:[%s3] sm:$0xf]
    %v173 = vld [vmem:[%s3 + $0x4] sm:$0xf]
    %v174 = vld [vmem:[%s3 + $0x8] sm:$0xf]
    %v175 = vld [vmem:[%s3 + $0xc] sm:$0xf]
    %v176 = vld [vmem:[%s3 + $0x10] sm:$0xf]
    %v177 = vld [vmem:[%s3 + $0x14] sm:$0xf]
    %v178 = vld [vmem:[%s3 + $0x18] sm:$0xf]
    %v179 = vld [vmem:[%s3 + $0x1c] sm:$0xf]
    %v180 = vld [vmem:[%s3 + $0x20] sm:$0xf]
    %v181 = vld [vmem:[%s3 + $0x24] sm:$0xf]
    %v182 = vld [vmem:[%s3 + $0x28] sm:$0xf]
    %v183 = vld [vmem:[%s3 + $0x2c] sm:$0xf]
    %v184 = vld [vmem:[%s3 + $0x30] sm:$0xf]
    %v185 = vld [vmem:[%s3 + $0x34] sm:$0xf]
    %v186 = vld [vmem:[%s3 + $0x38] sm:$0xf]
    %v187 = vld [vmem:[%s3 + $0x3c] sm:$0xf]
    %v188 = vld [vmem:[%s3 + $0x40] sm:$0xf]
    %v189 = vld [vmem:[%s3 + $0x44] sm:$0xf]
    %v190 = vld [vmem:[%s3 + $0x48] sm:$0xf]
    %v191 = vld [vmem:[%s3 + $0x4c] sm:$0xf]
    %v192 = vld [vmem:[%s3 + $0x50] sm:$0xf]
    %v193 = vld [vmem:[%s3 + $0x54] sm:$0xf]
    %v194 = vld [vmem:[%s3 + $0x58] sm:$0xf]
    %v195 = vld [vmem:[%s3 + $0x5c] sm:$0xf]
    %v196 = vld [vmem:[%s3 + $0x60] sm:$0xf]
    %v197 = vld [vmem:[%s3 + $0x64] sm:$0xf]
    %v198 = vld [vmem:[%s3 + $0x68] sm:$0xf]
    %v199 = vld [vmem:[%s3 + $0x6c] sm:$0xf]
    %v200 = vld [vmem:[%s3 + $0x70] sm:$0xf]
    %v201 = vld [vmem:[%s3 + $0x74] sm:$0xf]
    %v202 = vld [vmem:[%s3 + $0x78] sm:$0xf]
    %v203 = vld [vmem:[%s3 + $0x7c] sm:$0xf]
    %v204 = vld [vmem:[%s3 + $0x80] sm:$0xf]
    %v205 = vld [vmem:[%s3 + $0x84] sm:$0xf]
    %v206 = vld [vmem:[%s3 + $0x88] sm:$0xf]
    %v207 = vld [vmem:[%s3 + $0x8c] sm:$0xf]
    %v208 = vld [vmem:[%s3 + $0x90] sm:$0xf]
    %v209 = vld [vmem:[%s3 + $0x94] sm:$0xf]
    %v210 = vld [vmem:[%s3 + $0x98] sm:$0xf]
    %v211 = vld [vmem:[%s3 + $0x9c] sm:$0xf]
    %v212 = vld [vmem:[%s3 + $0xa0] sm:$0xf]
    %v213 = vld [vmem:[%s3 + $0xa4] sm:$0xf]
    %v214 = vld [vmem:[%s3 + $0xa8] sm:$0xf]
    %v215 = vld [vmem:[%s3 + $0xac] sm:$0xf]
    %v216 = vld [vmem:[%s3 + $0xb0] sm:$0xf]
    %v217 = vld [vmem:[%s3 + $0xb4] sm:$0xf]
    %v218 = vld [vmem:[%s3 + $0xb8] sm:$0xf]
    %v219 = vld [vmem:[%s3 + $0xbc] sm:$0xf]
    %v220 = vld [vmem:[%s4] sm:$0x1]
    %v222 = vlaneseq
    %v223 = vshrl.u32 %v222, 7
    %v224 = vsub.s32 0, %v223
    %v225 = vrot.slane %v220, %v224
    %v275 = vunpack.c.l.b16 %v172
    %v276 = vunpack.c.l.b16 %v173
    %v277 = vunpack.c.l.b16 %v174
    %v278 = vunpack.c.l.b16 %v175
    %v279 = vunpack.c.l.b16 %v176
    %v280 = vunpack.c.l.b16 %v177
    %v281 = vunpack.c.l.b16 %v178
    %v282 = vunpack.c.l.b16 %v179
    %v283 = vunpack.c.l.b16 %v180
    %v284 = vunpack.c.l.b16 %v181
    %v285 = vunpack.c.l.b16 %v182
    %v286 = vunpack.c.l.b16 %v183
    %v287 = vunpack.c.l.b16 %v184
    %v288 = vunpack.c.l.b16 %v185
    %v289 = vunpack.c.l.b16 %v186
    %v290 = vunpack.c.l.b16 %v187
    %v291 = vunpack.c.l.b16 %v188
    %v292 = vunpack.c.l.b16 %v189
    %v293 = vunpack.c.l.b16 %v190
    %v294 = vunpack.c.l.b16 %v191
    %v295 = vunpack.c.l.b16 %v192
    %v296 = vunpack.c.l.b16 %v193
    %v297 = vunpack.c.l.b16 %v194
    %v298 = vunpack.c.l.b16 %v195
    %v299 = vunpack.c.l.b16 %v196
    %v300 = vunpack.c.l.b16 %v197
    %v301 = vunpack.c.l.b16 %v198
    %v302 = vunpack.c.l.b16 %v199
    %v303 = vunpack.c.l.b16 %v200
    %v304 = vunpack.c.l.b16 %v201
    %v305 = vunpack.c.l.b16 %v202
    %v306 = vunpack.c.l.b16 %v203
    %v307 = vunpack.c.l.b16 %v204
    %v308 = vunpack.c.l.b16 %v205
    %v309 = vunpack.c.l.b16 %v206
    %v310 = vunpack.c.l.b16 %v207
    %v311 = vunpack.c.l.b16 %v208
    %v312 = vunpack.c.l.b16 %v209
    %v313 = vunpack.c.l.b16 %v210
    %v314 = vunpack.c.l.b16 %v211
    %v315 = vunpack.c.l.b16 %v212
    %v316 = vunpack.c.l.b16 %v213
    %v317 = vunpack.c.l.b16 %v214
    %v318 = vunpack.c.l.b16 %v215
    %v319 = vunpack.c.l.b16 %v216
    %v320 = vunpack.c.l.b16 %v217
    %v321 = vunpack.c.l.b16 %v218
    %v322 = vunpack.c.l.b16 %v219
    %v323 = vpack.c.b16 %v276, %v275
    %v324 = vpack.c.b16 %v278, %v277
    %v325 = vpack.c.b16 %v280, %v279
    %v326 = vpack.c.b16 %v282, %v281
    %v327 = vpack.c.b16 %v284, %v283
    %v328 = vpack.c.b16 %v286, %v285
    %v329 = vpack.c.b16 %v288, %v287
    %v330 = vpack.c.b16 %v290, %v289
    %v331 = vpack.c.b16 %v292, %v291
    %v332 = vpack.c.b16 %v294, %v293
    %v333 = vpack.c.b16 %v296, %v295
    %v334 = vpack.c.b16 %v298, %v297
    %v335 = vpack.c.b16 %v300, %v299
    %v336 = vpack.c.b16 %v302, %v301
    %v337 = vpack.c.b16 %v304, %v303
    %v338 = vpack.c.b16 %v306, %v305
    %v339 = vpack.c.b16 %v308, %v307
    %v340 = vpack.c.b16 %v310, %v309
    %v341 = vpack.c.b16 %v312, %v311
    %v342 = vpack.c.b16 %v314, %v313
    %v343 = vpack.c.b16 %v316, %v315
    %v344 = vpack.c.b16 %v318, %v317
    %v345 = vpack.c.b16 %v320, %v319
    %v346 = vpack.c.b16 %v322, %v321
    %371 = vmatprep.subr.bf16.mxu0 0
    %372 = vmatpush1.bf16.msra.mxu0 %v330
    %373 = vmatprep.subr.bf16.mxu0 0
    %374 = vmatpush1.bf16.msra.mxu0 %v329
    %375 = vmatprep.subr.bf16.mxu0 0
    %376 = vmatpush1.bf16.msra.mxu0 %v328
    %377 = vmatprep.subr.bf16.mxu0 0
    %378 = vmatpush1.bf16.msra.mxu0 %v327
    %379 = vmatprep.subr.bf16.mxu0 0
    %380 = vmatpush1.bf16.msra.mxu0 %v326
    %381 = vmatprep.subr.bf16.mxu0 0
    %382 = vmatpush1.bf16.msra.mxu0 %v325
    %383 = vmatprep.subr.bf16.mxu0 0
    %384 = vmatpush1.bf16.msra.mxu0 %v324
    %385 = vmatprep.subr.bf16.mxu0 0
    %386 = vmatpush1.bf16.msra.mxu0 %v323
    %387 = vmatprep.subr.bf16.mxu0 0
    %388 = vmatpush2.bf16.msra.mxu0 %v338
    %389 = vmatprep.subr.bf16.mxu0 0
    %390 = vmatpush2.bf16.msra.mxu0 %v337
    %391 = vmatprep.subr.bf16.mxu0 0
    %392 = vmatpush2.bf16.msra.mxu0 %v336
    %393 = vmatprep.subr.bf16.mxu0 0
    %394 = vmatpush2.bf16.msra.mxu0 %v335
    %395 = vmatprep.subr.bf16.mxu0 0
    %396 = vmatpush2.bf16.msra.mxu0 %v334
    %397 = vmatprep.subr.bf16.mxu0 0
    %398 = vmatpush2.bf16.msra.mxu0 %v333
    %399 = vmatprep.subr.bf16.mxu0 0
    %400 = vmatpush2.bf16.msra.mxu0 %v332
    %401 = vmatprep.subr.bf16.mxu0 0
    %402 = vmatpush2.bf16.msra.mxu0 %v331
    %403 = vmatprep.mubr.bf16.mxu0 %v170
    %404 = vmatmul.mubr.bf16.gmra.mxu0 %v169
    %v405 = vpop.f32.mrf.mxu0
    %v406 = vadd.f32 %v225, %v405
    %v407 = vpop.f32.mrf.mxu0
    %v408 = vpop.f32.mrf.mxu0
    %v409 = vpop.f32.mrf.mxu0
    %410 = vdwg.mxu0
    %411 = vmatprep.subr.bf16.mxu0 0
    %412 = vmatpush1.bf16.msra.mxu0 %v346
    %413 = vmatprep.subr.bf16.mxu0 0
    %414 = vmatpush1.bf16.msra.mxu0 %v345
    %415 = vmatprep.subr.bf16.mxu0 0
    %416 = vmatpush1.bf16.msra.mxu0 %v344
    %417 = vmatprep.subr.bf16.mxu0 0
    %418 = vmatpush1.bf16.msra.mxu0 %v343
    %419 = vmatprep.subr.bf16.mxu0 0
    %420 = vmatpush1.bf16.msra.mxu0 %v342
    %421 = vmatprep.subr.bf16.mxu0 0
    %422 = vmatpush1.bf16.msra.mxu0 %v341
    %423 = vmatprep.subr.bf16.mxu0 0
    %424 = vmatpush1.bf16.msra.mxu0 %v340
    %425 = vmatprep.subr.bf16.mxu0 0
    %426 = vmatpush1.bf16.msra.mxu0 %v339
    %427 = vmatprep.subr.bf16.mxu0 0
    %428 = vmatpush2.bf16.msra.mxu0 0
    %429 = vmatprep.subr.bf16.mxu0 0
    %430 = vmatpush2.bf16.msra.mxu0 0
    %431 = vmatprep.subr.bf16.mxu0 0
    %432 = vmatpush2.bf16.msra.mxu0 0
    %433 = vmatprep.subr.bf16.mxu0 0
    %434 = vmatpush2.bf16.msra.mxu0 0
    %435 = vmatprep.subr.bf16.mxu0 0
    %436 = vmatpush2.bf16.msra.mxu0 0
    %437 = vmatprep.subr.bf16.mxu0 0
    %438 = vmatpush2.bf16.msra.mxu0 0
    %439 = vmatprep.subr.bf16.mxu0 0
    %440 = vmatpush2.bf16.msra.mxu0 0
    %441 = vmatprep.subr.bf16.mxu0 0
    %442 = vmatpush2.bf16.msra.mxu0 0
    %443 = vmatprep.mubr.bf16.mxu0 0
    %444 = vmatmul.mubr.bf16.gmra.mxu0 %v171
    %v445 = vpop.f32.mrf.mxu0
    %v446 = vadd.f32 %v406, %v445
    %v447 = vpop.f32.mrf.mxu0
    %v448 = vpop.f32.mrf.mxu0
    %v449 = vpop.f32.mrf.mxu0
    %450 = vdwg.mxu0
    %vm451 = vcmask 130048
    %452 = vst.msk [vmem:[#allocation2] sm:$0xff] %vm451, %v446
    // Predicated region
    $region22: #{tpu_custom_call.1} parent=1 // pred_check
      _
    $region23: #{tpu_custom_call.1} parent=1 // pred_check_branch
      %454 = sbr.rel (0) target = $region25
    $region24: #{tpu_custom_call.1} parent=1 // pred_region
      %s456 = ssub.s32 128, 128
      %457 = vsyncadd [#allocation3], %s456
      %s459 = sshll.u32 [#allocation2], 4
      %s460 = int_to_ptr.vmem [resolvable:$true] %s459
      %462 = dma.vmem_to_hbm [thread:$0]  %s460, 128, %s5, [#allocation3]
    $region25: #{tpu_custom_call.1} parent=1 // pred_fallthru
      _
    // Predicated region
    $region26: #{tpu_custom_call.1} parent=1 // pred_check
      _
    $region27: #{tpu_custom_call.1} parent=1 // pred_check_branch
      %464 = sbr.rel (0) target = $region29
    $region28: #{tpu_custom_call.1} parent=1 // pred_region
      %465 = dma.done [#allocation3], 128
    $region29: #{tpu_custom_call.1} parent=1 // pred_fallthru
      _
    %466 = vsyncpa [#allocation3], 1

</llo_original>
